<compile_context>
chip_gen: v7x
topology: tpu7x:2x2x1
jax: 0.10.0
libtpu: 0.0.40
codegen_flags: <defaults>
</compile_context>

<pallas_src>
import jax
import jax.numpy as jnp
from jax import lax
from jax.experimental import pallas as pl
from jax.experimental.pallas import tpu as pltpu

_LANE = 128
_ALIGN = 16 * _LANE  # keeps rows a multiple of 16 (f32/bf16/f16 sublane tiling)


def _make_psnr_kernel(tile_rows, steps_per_core, rows_valid, needs_mask):
    def kernel(x_ref, y_ref, out_ref):
        s = pl.program_id(1)

        @pl.when(s == 0)
        def _():
            out_ref[...] = jnp.zeros_like(out_ref)

        diff = x_ref[...].astype(jnp.float32) - y_ref[...].astype(jnp.float32)
        sq = diff * diff

        if needs_mask:
            # Mask rows past the real array (partial last tile / clamped
            # duplicate tiles). jnp.where does not propagate garbage values.
            tile_idx = pl.program_id(0) * steps_per_core + s
            row_ids = tile_idx * tile_rows + lax.broadcasted_iota(
                jnp.int32, (tile_rows, _LANE), 0)
            sq = jnp.where(row_ids < rows_valid, sq, jnp.float32(0.0))

        # (tile_rows, 128) -> (tile_rows//8, 8, 128); leading-dim sum is a
        # chain of elementwise vreg adds (VPU only) -- no per-step XLU/SMEM
        # scalar reduce on the hot path.
        out_ref[...] += sq.reshape(tile_rows // 8, 8, _LANE).sum(axis=0)

    return kernel


def psnr_score(x, y, *, max_tile_rows=2048, num_parallel=2):
    """10 * log10(1 / mean((x - y)^2)) over all elements. Returns a scalar."""
    assert x.shape == y.shape, (x.shape, y.shape)
    n = int(x.size)

    # Stream low-precision floats as-is (widened in-kernel); others -> f32.
    if x.dtype not in (jnp.float32, jnp.bfloat16, jnp.float16):
        x = x.astype(jnp.float32)
    if y.dtype not in (jnp.float32, jnp.bfloat16, jnp.float16):
        y = y.astype(jnp.float32)

    xf = x.reshape(-1)
    yf = y.reshape(-1)

    padded = pl.cdiv(n, _ALIGN) * _ALIGN
    if padded != n:
        # Only misaligned sizes pay this copy (pad <= 2047 elements, zero in
        # both inputs so it contributes exactly 0 to the SSE).
        xf = jnp.pad(xf, (0, padded - n))
        yf = jnp.pad(yf, (0, padded - n))

    rows = padded // _LANE                 # multiple of 16
    tile_rows = min(max_tile_rows, rows)   # multiple of 16 (or the full extent)
    total_tiles = pl.cdiv(rows, tile_rows)
    npar = num_parallel if total_tiles >= num_parallel else 1
    steps = pl.cdiv(total_tiles, npar)
    needs_mask = (npar * steps * tile_rows) != rows
    last_tile = total_tiles - 1

    x2d = xf.reshape(rows, _LANE)
    y2d = yf.reshape(rows, _LANE)

    def in_idx(p, s):
        t = p * steps + s
        if npar * steps != total_tiles:
            t = jnp.minimum(t, last_tile)  # keep DMAs in bounds; masked anyway
        return (t, 0)

    kernel = _make_psnr_kernel(tile_rows, steps, rows, needs_mask)

    partials = pl.pallas_call(
        kernel,
        out_shape=jax.ShapeDtypeStruct((npar, 8, _LANE), jnp.float32),
        grid_spec=pltpu.PrefetchScalarGridSpec(
            num_scalar_prefetch=0,
            grid=(npar, steps),
            in_specs=[
                pl.BlockSpec((tile_rows, _LANE), in_idx),
                pl.BlockSpec((tile_rows, _LANE), in_idx),
            ],
            out_specs=pl.BlockSpec((None, 8, _LANE), lambda p, s: (p, 0, 0)),
        ),
        compiler_params=pltpu.CompilerParams(
            dimension_semantics=("parallel", "arbitrary"),
            vmem_limit_bytes=32 * 1024 * 1024,
        ),
    )(x2d, y2d)

    # Tiny epilogue: cross-lane reduce of npar x (8,128) partials + log10.
    sse = jnp.sum(partials)
    # 1/n computed in host double precision (n itself may exceed 2^24).
    mse = sse * jnp.float32(1.0 / n)
    # Note: mse == 0 -> +inf PSNR, matching the PyTorch module's behavior.
    return 10.0 * jnp.log10(1.0 / mse)


if __name__ == "__main__":
    key = jax.random.PRNGKey(0)
    kx, ky = jax.random.split(key)

    # Small NCHW image-like inputs, matching the PyTorch module's usage.
    x = jax.random.uniform(kx, (2, 4, 16, 16), dtype=jnp.float32)
    y = jax.random.uniform(ky, (2, 4, 16, 16), dtype=jnp.float32)

    psnr = psnr_score(x, y)
    jax.block_until_ready(psnr)

    mse_ref = jnp.mean((x - y) ** 2)
    psnr_ref = 10.0 * jnp.log10(1.0 / mse_ref)
    assert jnp.allclose(psnr, psnr_ref, rtol=1e-5, atol=1e-5), (psnr, psnr_ref)

    # Second check exercising the multi-tile / parallel-split / masked-tail
    # path (non-aligned element count, partial last tile, clamped grid slot).
    k2x, k2y = jax.random.split(jax.random.PRNGKey(0), 2)
    x2 = jax.random.uniform(k2x, (1, 5, 320, 330), dtype=jnp.float32)
    y2 = jax.random.uniform(k2y, (1, 5, 320, 330), dtype=jnp.float32)
    psnr2 = psnr_score(x2, y2)
    jax.block_until_ready(psnr2)
    psnr2_ref = 10.0 * jnp.log10(1.0 / jnp.mean((x2 - y2) ** 2))
    assert jnp.allclose(psnr2, psnr2_ref, rtol=1e-4, atol=1e-4), (psnr2, psnr2_ref)

    print("KERNEL_OK")
</pallas_src>

<mosaic_0001>
module attributes {stable_mosaic.version = 11 : i64} {
  func.func @kernel(%arg0: i32, %arg1: i32, %arg2: memref<16x128xf32, #tpu.memory_space<vmem>>, %arg3: memref<16x128xf32, #tpu.memory_space<vmem>>, %arg4: memref<1x8x128xf32, #tpu.memory_space<vmem>>) attributes {dimension_semantics = [#tpu.dimension_semantics<parallel>, #tpu.dimension_semantics<arbitrary>], iteration_bounds = array<i64: 1, 1>, scalar_prefetch = 0 : i64, scratch_operands = 0 : i64, tpu.core_type = #tpu.core_type<tc>, window_params = [{transform_indices = @transform_0, window_bounds = array<i64: 16, 128>}, {transform_indices = @transform_1, window_bounds = array<i64: 16, 128>}, {transform_indices = @transform_2, window_bounds = array<i64: 1, 8, 128>}]} {
    %c0_i32 = arith.constant 0 : i32
    %0 = arith.cmpi eq, %arg1, %c0_i32 : i32
    %1 = arith.extui %0 : i1 to i32
    %c0_i32_0 = arith.constant 0 : i32
    %2 = arith.cmpi ne, %1, %c0_i32_0 : i32
    scf.if %2 {
      %cst_10 = arith.constant 0.000000e+00 : f32
      %15 = vector.broadcast %cst_10 : f32 to vector<8x128xf32>
      %c0_11 = arith.constant 0 : index
      %c0_12 = arith.constant 0 : index
      %c0_13 = arith.constant 0 : index
      %16 = vector.load %arg4[%c0_11, %c0_12, %c0_13] : memref<1x8x128xf32, #tpu.memory_space<vmem>>, vector<1x8x128xf32>
      %17 = vector.shape_cast %16 : vector<1x8x128xf32> to vector<8x128xf32>
      %18 = vector.shape_cast %15 : vector<8x128xf32> to vector<1x8x128xf32>
      tpu.vector_store %arg4[%c0_11, %c0_12, %c0_13], %18 {strides = array<i32>} : memref<1x8x128xf32, #tpu.memory_space<vmem>>, vector<1x8x128xf32>,
    } else {
    }
    %c0 = arith.constant 0 : index
    %c0_1 = arith.constant 0 : index
    %3 = vector.load %arg2[%c0, %c0_1] : memref<16x128xf32, #tpu.memory_space<vmem>>, vector<16x128xf32>
    %c0_2 = arith.constant 0 : index
    %c0_3 = arith.constant 0 : index
    %4 = vector.load %arg3[%c0_2, %c0_3] : memref<16x128xf32, #tpu.memory_space<vmem>>, vector<16x128xf32>
    %5 = arith.subf %3, %4 : vector<16x128xf32>
    %6 = arith.mulf %5, %5 : vector<16x128xf32>
    %c0_4 = arith.constant 0 : index
    %c0_5 = arith.constant 0 : index
    %c0_6 = arith.constant 0 : index
    %7 = vector.load %arg4[%c0_4, %c0_5, %c0_6] : memref<1x8x128xf32, #tpu.memory_space<vmem>>, vector<1x8x128xf32>
    %8 = vector.shape_cast %7 : vector<1x8x128xf32> to vector<8x128xf32>
    %9 = vector.shape_cast %6 : vector<16x128xf32> to vector<2x8x128xf32>
    %cst = arith.constant dense<0.000000e+00> : vector<8x128xf32>
    %10 = vector.multi_reduction <add>, %9, %cst [0] : vector<2x8x128xf32> to vector<8x128xf32>
    %11 = arith.addf %8, %10 : vector<8x128xf32>
    %c0_7 = arith.constant 0 : index
    %c0_8 = arith.constant 0 : index
    %c0_9 = arith.constant 0 : index
    %12 = vector.load %arg4[%c0_7, %c0_8, %c0_9] : memref<1x8x128xf32, #tpu.memory_space<vmem>>, vector<1x8x128xf32>
    %13 = vector.shape_cast %12 : vector<1x8x128xf32> to vector<8x128xf32>
    %14 = vector.shape_cast %11 : vector<8x128xf32> to vector<1x8x128xf32>
    tpu.vector_store %arg4[%c0_7, %c0_8, %c0_9], %14 {strides = array<i32>} : memref<1x8x128xf32, #tpu.memory_space<vmem>>, vector<1x8x128xf32>,
    return
  }
  func.func @transform_0(%arg0: i32, %arg1: i32) -> (i32, i32) {
    %c1_i32 = arith.constant 1 : i32
    %0 = arith.muli %arg0, %c1_i32 : i32
    %1 = arith.addi %0, %arg1 : i32
    %c0_i32 = arith.constant 0 : i32
    %c0_i32_0 = arith.constant 0 : i32
    return %1, %c0_i32 : i32, i32
  }
  func.func @transform_1(%arg0: i32, %arg1: i32) -> (i32, i32) {
    %c1_i32 = arith.constant 1 : i32
    %0 = arith.muli %arg0, %c1_i32 : i32
    %1 = arith.addi %0, %arg1 : i32
    %c0_i32 = arith.constant 0 : i32
    %c0_i32_0 = arith.constant 0 : i32
    return %1, %c0_i32 : i32, i32
  }
  func.func @transform_2(%arg0: i32, %arg1: i32) -> (i32, i32, i32) {
    %c0_i32 = arith.constant 0 : i32
    %c0_i32_0 = arith.constant 0 : i32
    %c0_i32_1 = arith.constant 0 : i32
    return %arg0, %c0_i32, %c0_i32_0 : i32, i32, i32
  }
}

</mosaic_0001>

<llo_original>
// kernel: tpu_custom_call.1
$region0: #{tpu_custom_call.1}
  #allocation0 [shape = 'u32[]', space=smem, size = 0x4, offset = 0x4, fixed_abs, tag = 'smem constant byte address 0x4 - core index']
  #allocation1 [shape = 'u32[144,128]{1,0:T(1,128)}', space=vmem, size = 0x12000, scoped, tag = 'internal scratch']
  %s0 = inlined_call_operand.hbm [shape: f32[16,128], index: 0, kind: input, shape index: {}]
  %s1 = inlined_call_operand.hbm [shape: f32[16,128], index: 1, kind: input, shape index: {}]
  %s2 = inlined_call_operand.hbm [shape: f32[1,8,128], index: 2, kind: output, shape index: {}]
  %s3 = sld [smem:[#allocation0]]
  $region30: #{tpu_custom_call.1} parent=0
    _
  %s5 = ssub.s32 1, %s3
  %s6 = scalar_select 0, %s5, %s3
  $region1: #{tpu_custom_call.1} parent=0
    #allocation2 [shape = 'u8[8192]{0}', space=vmem, size = 0x2000, scoped, tag = 'input window, operand 0, single buffered']
    #allocation3 [shape = 's32[1]{0}', space=sflag, size = 0x4, scoped, tag = 'scoped memory for tpu_custom_call.1']
    #allocation4 [shape = 's32[1]{0}', space=sflag, size = 0x4, scoped, tag = 'scoped memory for tpu_custom_call.1']
    #allocation5 [shape = 'u8[8192]{0}', space=vmem, size = 0x2000, scoped, tag = 'input window, operand 1, single buffered']
    #allocation6 [shape = 's32[1]{0}', space=sflag, size = 0x4, scoped, tag = 'scoped memory for tpu_custom_call.1']
    #allocation7 [shape = 'u8[4096]{0}', space=vmem, size = 0x1000, scoped, tag = 'output window, operand 0, single buffered']
    %7 = vsyncpa [#allocation3], 0
    %8 = vsyncpa [#allocation6], 0
    %9 = vsyncpa [#allocation4], 0
    // Predicated region
    $region2: #{tpu_custom_call.1} parent=1 // pred_check
      _
    $region3: #{tpu_custom_call.1} parent=1 // pred_check_branch
      %11 = sbr.rel (0) target = $region5
    $region4: #{tpu_custom_call.1} parent=1 // pred_region
      %s12 = sadd.s32 0, 0
      %s13 = smul.u32 2, %s12
      %s15 = ssub.s32 256, 256
      %16 = vsyncadd [#allocation3], %s15
      %s17 = smul.addr %s13, 128
      %s18 = scalar_lea.hbm %s0, %s17
      %s19 = sshll.u32 [#allocation2], 4
      %s20 = int_to_ptr.vmem [resolvable:$true] %s19
      %25 = dma.hbm_to_vmem [thread:$0]  %s18, 256, %s20, [#allocation3], 128, 128, 8
    $region5: #{tpu_custom_call.1} parent=1 // pred_fallthru
      _
    // Predicated region
    $region6: #{tpu_custom_call.1} parent=1 // pred_check
      _
    $region7: #{tpu_custom_call.1} parent=1 // pred_check_branch
      %27 = sbr.rel (0) target = $region9
    $region8: #{tpu_custom_call.1} parent=1 // pred_region
      %s28 = sadd.s32 0, 0
      %s29 = smul.u32 2, %s28
      %s31 = ssub.s32 256, 256
      %32 = vsyncadd [#allocation6], %s31
      %s33 = smul.addr %s29, 128
      %s34 = scalar_lea.hbm %s1, %s33
      %s35 = sshll.u32 [#allocation5], 4
      %s36 = int_to_ptr.vmem [resolvable:$true] %s35
      %41 = dma.hbm_to_vmem [thread:$0]  %s34, 256, %s36, [#allocation6], 128, 128, 8
    $region9: #{tpu_custom_call.1} parent=1 // pred_fallthru
      _
    // Predicated region
    $region10: #{tpu_custom_call.1} parent=1 // pred_check
      _
    $region11: #{tpu_custom_call.1} parent=1 // pred_check_branch
      %43 = sbr.rel (0) target = $region13
    $region12: #{tpu_custom_call.1} parent=1 // pred_region
      %44 = dma.done [#allocation3], 256
    $region13: #{tpu_custom_call.1} parent=1 // pred_fallthru
      _
    // Predicated region
    $region14: #{tpu_custom_call.1} parent=1 // pred_check
      _
    $region15: #{tpu_custom_call.1} parent=1 // pred_check_branch
      %46 = sbr.rel (0) target = $region17
    $region16: #{tpu_custom_call.1} parent=1 // pred_region
      %47 = dma.done [#allocation6], 256
    $region17: #{tpu_custom_call.1} parent=1 // pred_fallthru
      _
    %s48 = sadd.s32 0, 0
    %s49 = smul.u32 2, %s48
    %s50 = sadd.s32 0, 0
    %s51 = smul.u32 2, %s50
    %p52 = scmp.eq.s32.totalorder 0, 0
    // Predicated region
    $region18: #{tpu_custom_call.1} parent=1 // pred_check
      %p53 = pneg %p52
    $region19: #{tpu_custom_call.1} parent=1 // pred_check_branch
      %55 = sbr.rel (%p53) target = $region21
    $region20: #{tpu_custom_call.1} parent=1 // pred_region
      %56 = vst [vmem:[#allocation7] sm:$0xff] 0.0
    $region21: #{tpu_custom_call.1} parent=1 // pred_fallthru
      _
    %v57 = vld [vmem:[#allocation2] sm:$0xff]
    %v58 = vld [vmem:[#allocation2 + $0x8] sm:$0xff]
    %v59 = vld [vmem:[#allocation5] sm:$0xff]
    %v60 = vld [vmem:[#allocation5 + $0x8] sm:$0xff]
    %v61 = vsub.f32 %v57, %v59
    %v62 = vsub.f32 %v58, %v60
    %v63 = vmul.f32 %v61, %v61
    %v64 = vmul.f32 %v62, %v62
    %v65 = vld [vmem:[#allocation7] sm:$0xff]
    %v66 = vadd.f32 %v63, %v64
    %v67 = vadd.f32 %v65, %v66
    %68 = vst [vmem:[#allocation7] sm:$0xff] %v67
    // Predicated region
    $region22: #{tpu_custom_call.1} parent=1 // pred_check
      _
    $region23: #{tpu_custom_call.1} parent=1 // pred_check_branch
      %70 = sbr.rel (0) target = $region25
    $region24: #{tpu_custom_call.1} parent=1 // pred_region
      %s72 = ssub.s32 128, 128
      %73 = vsyncadd [#allocation4], %s72
      %s75 = sshll.u32 [#allocation7], 4
      %s76 = int_to_ptr.vmem [resolvable:$true] %s75
      %78 = dma.vmem_to_hbm [thread:$0]  %s76, 128, %s2, [#allocation4]
    $region25: #{tpu_custom_call.1} parent=1 // pred_fallthru
      _
    // Predicated region
    $region26: #{tpu_custom_call.1} parent=1 // pred_check
      _
    $region27: #{tpu_custom_call.1} parent=1 // pred_check_branch
      %80 = sbr.rel (0) target = $region29
    $region28: #{tpu_custom_call.1} parent=1 // pred_region
      %81 = dma.done [#allocation4], 128
    $region29: #{tpu_custom_call.1} parent=1 // pred_fallthru
      _
    %82 = vsyncpa [#allocation3], 1
    %83 = vsyncpa [#allocation6], 1
    %84 = vsyncpa [#allocation4], 1

</llo_original>
